<compile_context>
chip_gen: v5e
topology: v5e:2x2
jax: 0.10.0
libtpu: 0.0.40
codegen_flags: <defaults>
</compile_context>

<pallas_src>
import jax
import jax.numpy as jnp
from jax.experimental import pallas as pl
from jax.experimental.pallas import tpu as pltpu

MEAN = 0.0
STDEV = 1.0

_LANES = 1024          # last-dim width: multiple of 128 -> lane-dense stores
_MAX_TILE_ROWS = 512   # 512*1024*4B = 2 MiB per buffer


def _round_up(x: int, m: int) -> int:
    return (x + m - 1) // m * m


def _noise_kernel(seed_ref, x_ref, o_ref):
    tr, lanes = x_ref.shape
    pid = pl.program_id(0)

    # Global element index of every element in this tile (counter for the PRNG).
    row = jax.lax.broadcasted_iota(jnp.int32, (tr, lanes), 0)
    col = jax.lax.broadcasted_iota(jnp.int32, (tr, lanes), 1)
    gidx = (pid * tr + row) * lanes + col
    # Fold the seed in (scalar from SMEM); hash below decorrelates the streams.
    gidx = gidx + seed_ref[0] * jnp.int32(1000003)

    # lowbias32-style integer mixer (uint32, wraps mod 2^32).
    u = jax.lax.bitcast_convert_type(gidx, jnp.uint32)
    u = u ^ jnp.uint32(0x9E3779B9)
    u = u ^ (u >> 16)
    u = u * jnp.uint32(0x7FEB352D)
    u = u ^ (u >> 15)
    u = u * jnp.uint32(0x846CA68B)
    u = u ^ (u >> 16)

    # Top 23 bits -> mantissa bit-trick: bit pattern in [1.0, 2.0), minus 1 -> U[0, 1).
    mant = (u >> 9) | jnp.uint32(0x3F800000)
    uniform = jax.lax.bitcast_convert_type(mant, jnp.float32) - jnp.float32(1.0)

    noise = uniform * jnp.float32(STDEV) + jnp.float32(MEAN)
    o_ref[...] = x_ref[...] + noise.astype(o_ref.dtype)


def noise_forward(d_coarse: jax.Array, seed: int = 0) -> jax.Array:
    """d_coarse: any-shape float tensor (e.g. NCHW). Returns d_coarse + U[0,1)*stdev + mean."""
    orig_shape = d_coarse.shape
    orig_dtype = d_coarse.dtype
    n = d_coarse.size

    # Lane-dense 2-D view: (rows, 1024), rows padded so blocks divide exactly.
    rows = _round_up(max(1, -(-n // _LANES)), 8)
    tile_rows = _MAX_TILE_ROWS if rows >= _MAX_TILE_ROWS else rows
    rows = _round_up(rows, tile_rows)
    padded = rows * _LANES

    flat = jnp.ravel(d_coarse)
    if padded != n:
        flat = jnp.pad(flat, (0, padded - n))
    x2d = flat.reshape(rows, _LANES)

    seed_arr = jnp.asarray([seed], dtype=jnp.int32)
    grid = (rows // tile_rows,)

    out2d = pl.pallas_call(
        _noise_kernel,
        out_shape=jax.ShapeDtypeStruct(x2d.shape, x2d.dtype),
        grid=grid,
        in_specs=[
            pl.BlockSpec(memory_space=pltpu.MemorySpace.SMEM),     # seed scalar
            pl.BlockSpec((tile_rows, _LANES), lambda i: (i, 0)),   # input tile
        ],
        out_specs=pl.BlockSpec((tile_rows, _LANES), lambda i: (i, 0)),
        input_output_aliases={1: 0},
        compiler_params=pltpu.CompilerParams(
            dimension_semantics=("parallel",),
        ),
    )(seed_arr, x2d)

    return out2d.reshape(-1)[:n].reshape(orig_shape).astype(orig_dtype)


if __name__ == "__main__":
    key = jax.random.PRNGKey(0)
    B, C, H, W = 2, 4, 16, 16
    d_coarse = jax.random.normal(key, (B, C, H, W), dtype=jnp.float32)

    d_noised = noise_forward(d_coarse, seed=0)
    jax.block_until_ready(d_noised)

    # Sanity checks: shape/dtype preserved; added noise lies in [0, 1) and is non-degenerate.
    assert d_noised.shape == d_coarse.shape
    assert d_noised.dtype == d_coarse.dtype
    diff = d_noised - d_coarse
    assert bool(jnp.all(diff >= -1e-5)) and bool(jnp.all(diff < 1.0 + 1e-5))
    assert float(jnp.std(diff)) > 0.1  # roughly uniform, not constant

    print("KERNEL_OK")
</pallas_src>

<mosaic_0001>
module attributes {stable_mosaic.version = 11 : i64} {
  func.func @_noise_kernel(%arg0: i32, %arg1: memref<1xi32, #tpu.memory_space<smem>>, %arg2: memref<8x1024xf32, #tpu.memory_space<vmem>>, %arg3: memref<8x1024xf32, #tpu.memory_space<vmem>>) attributes {dimension_semantics = [#tpu.dimension_semantics<parallel>], iteration_bounds = array<i64: 1>, scalar_prefetch = 0 : i64, scratch_operands = 0 : i64, tpu.core_type = #tpu.core_type<tc>, window_params = [{transform_indices = @transform_0, window_bounds = array<i64: 1>}, {transform_indices = @transform_1, window_bounds = array<i64: 8, 1024>}, {transform_indices = @transform_2, window_bounds = array<i64: 8, 1024>}]} {
    %0 = tpu.iota {dimensions = array<i32: 0>} : vector<8x1024xi32>
    %1 = tpu.iota {dimensions = array<i32: 1>} : vector<8x1024xi32>
    %c8_i32 = arith.constant 8 : i32
    %2 = arith.muli %arg0, %c8_i32 : i32
    %3 = vector.broadcast %2 : i32 to vector<8x1024xi32>
    %4 = arith.addi %3, %0 : vector<8x1024xi32>
    %c1024_i32 = arith.constant 1024 : i32
    %5 = vector.broadcast %c1024_i32 : i32 to vector<8x1024xi32>
    %6 = arith.muli %4, %5 : vector<8x1024xi32>
    %7 = arith.addi %6, %1 : vector<8x1024xi32>
    %c0 = arith.constant 0 : index
    %8 = memref.load %arg1[%c0] : memref<1xi32, #tpu.memory_space<smem>>
    %c1000003_i32 = arith.constant 1000003 : i32
    %9 = arith.muli %8, %c1000003_i32 : i32
    %10 = vector.broadcast %9 : i32 to vector<8x1024xi32>
    %11 = arith.addi %7, %10 : vector<8x1024xi32>
    %12 = tpu.bitcast %11 : vector<8x1024xi32> -> vector<8x1024xi32>
    %c-1640531527_i32 = arith.constant -1640531527 : i32
    %13 = vector.broadcast %c-1640531527_i32 : i32 to vector<8x1024xi32>
    %14 = arith.xori %12, %13 : vector<8x1024xi32>
    %c16_i32 = arith.constant 16 : i32
    %15 = vector.broadcast %c16_i32 : i32 to vector<8x1024xi32>
    %16 = arith.shrui %14, %15 : vector<8x1024xi32>
    %17 = arith.xori %14, %16 : vector<8x1024xi32>
    %c2146121005_i32 = arith.constant 2146121005 : i32
    %18 = vector.broadcast %c2146121005_i32 : i32 to vector<8x1024xi32>
    %19 = arith.muli %17, %18 : vector<8x1024xi32>
    %c15_i32 = arith.constant 15 : i32
    %20 = vector.broadcast %c15_i32 : i32 to vector<8x1024xi32>
    %21 = arith.shrui %19, %20 : vector<8x1024xi32>
    %22 = arith.xori %19, %21 : vector<8x1024xi32>
    %c-2073254261_i32 = arith.constant -2073254261 : i32
    %23 = vector.broadcast %c-2073254261_i32 : i32 to vector<8x1024xi32>
    %24 = arith.muli %22, %23 : vector<8x1024xi32>
    %c16_i32_0 = arith.constant 16 : i32
    %25 = vector.broadcast %c16_i32_0 : i32 to vector<8x1024xi32>
    %26 = arith.shrui %24, %25 : vector<8x1024xi32>
    %27 = arith.xori %24, %26 : vector<8x1024xi32>
    %c9_i32 = arith.constant 9 : i32
    %28 = vector.broadcast %c9_i32 : i32 to vector<8x1024xi32>
    %29 = arith.shrui %27, %28 : vector<8x1024xi32>
    %c1065353216_i32 = arith.constant 1065353216 : i32
    %30 = vector.broadcast %c1065353216_i32 : i32 to vector<8x1024xi32>
    %31 = arith.ori %29, %30 : vector<8x1024xi32>
    %32 = tpu.bitcast %31 : vector<8x1024xi32> -> vector<8x1024xf32>
    %cst = arith.constant 1.000000e+00 : f32
    %33 = vector.broadcast %cst : f32 to vector<8x1024xf32>
    %34 = arith.subf %32, %33 : vector<8x1024xf32>
    %cst_1 = arith.constant 1.000000e+00 : f32
    %35 = vector.broadcast %cst_1 : f32 to vector<8x1024xf32>
    %36 = arith.mulf %34, %35 : vector<8x1024xf32>
    %cst_2 = arith.constant 0.000000e+00 : f32
    %37 = vector.broadcast %cst_2 : f32 to vector<8x1024xf32>
    %38 = arith.addf %36, %37 : vector<8x1024xf32>
    %c0_3 = arith.constant 0 : index
    %c0_4 = arith.constant 0 : index
    %39 = vector.load %arg2[%c0_3, %c0_4] : memref<8x1024xf32, #tpu.memory_space<vmem>>, vector<8x1024xf32>
    %40 = arith.addf %39, %38 : vector<8x1024xf32>
    %c0_5 = arith.constant 0 : index
    %c0_6 = arith.constant 0 : index
    %41 = vector.load %arg3[%c0_5, %c0_6] : memref<8x1024xf32, #tpu.memory_space<vmem>>, vector<8x1024xf32>
    tpu.vector_store %arg3[%c0_5, %c0_6], %40 {strides = array<i32>} : memref<8x1024xf32, #tpu.memory_space<vmem>>, vector<8x1024xf32>,
    return
  }
  func.func @transform_0(%arg0: i32) -> i32 {
    %c0_i32 = arith.constant 0 : i32
    %c0_i32_0 = arith.constant 0 : i32
    return %c0_i32 : i32
  }
  func.func @transform_1(%arg0: i32) -> (i32, i32) {
    %c0_i32 = arith.constant 0 : i32
    %c0_i32_0 = arith.constant 0 : i32
    return %arg0, %c0_i32 : i32, i32
  }
  func.func @transform_2(%arg0: i32) -> (i32, i32) {
    %c0_i32 = arith.constant 0 : i32
    %c0_i32_0 = arith.constant 0 : i32
    return %arg0, %c0_i32 : i32, i32
  }
}

</mosaic_0001>

<llo_original>
// kernel: tpu_custom_call.1
$region0: #{tpu_custom_call.1}
  #allocation0 [shape = 'u32[]', space=smem, size = 0x4, offset = 0x4, fixed_abs, tag = 'smem constant byte address 0x4 - core index']
  #allocation1 [shape = 'u32[72,128]{1,0:T(1,128)}', space=vmem, size = 0x9000, scoped, tag = 'internal scratch']
  #allocation2 [shape = 's32[1]{0:T(128)S(6)}', space=smem, size = 0x200, scoped, tag = 'scoped memory for tpu_custom_call.1']
  %s0 = inlined_call_operand.<no memory space> [shape: s32[1], index: 0, kind: input, shape index: {}]
  %s1 = inlined_call_operand.hbm [shape: f32[8,1024], index: 1, kind: input, shape index: {}, may-alias: {1,2}]
  %s2 = inlined_call_operand.hbm [shape: f32[8,1024], index: 2, kind: output, shape index: {}, may-alias: {1,2}]
  %s3 = sld [smem:[#allocation0]]
  $region22: #{tpu_custom_call.1} parent=0
    _
  %s5 = ssub.s32 1, %s3
  %s6 = scalar_select 0, %s5, %s3
  %7 = sst [smem:[#allocation2]] %s0
  $region1: #{tpu_custom_call.1} parent=0
    #allocation3 [shape = 'u8[32768]{0}', space=vmem, size = 0x8000, scoped, tag = 'input window, operand 1, single buffered']
    #allocation4 [shape = 's32[1]{0}', space=sflag, size = 0x4, scoped, tag = 'scoped memory for tpu_custom_call.1']
    #allocation5 [shape = 's32[1]{0}', space=sflag, size = 0x4, scoped, tag = 'scoped memory for tpu_custom_call.1']
    #allocation6 [shape = 'u8[32768]{0}', space=vmem, size = 0x8000, scoped, tag = 'output window, operand 0, single buffered']
    %8 = vsyncpa [#allocation4], 0
    %9 = vsyncpa [#allocation5], 0
    // Predicated region
    $region2: #{tpu_custom_call.1} parent=1 // pred_check
      _
    $region3: #{tpu_custom_call.1} parent=1 // pred_check_branch
      %11 = sbr.rel (0) target = $region5
    $region4: #{tpu_custom_call.1} parent=1 // pred_region
      _
    $region5: #{tpu_custom_call.1} parent=1 // pred_fallthru
      _
    // Predicated region
    $region6: #{tpu_custom_call.1} parent=1 // pred_check
      _
    $region7: #{tpu_custom_call.1} parent=1 // pred_check_branch
      %13 = sbr.rel (0) target = $region9
    $region8: #{tpu_custom_call.1} parent=1 // pred_region
      %15 = vsyncadd [#allocation4], 0
      %s17 = sshll.u32 %s1, 4
      %s18 = int_to_ptr.hbm [resolvable:$true] %s17
      %s19 = sshll.u32 [#allocation3], 4
      %s20 = int_to_ptr.vmem [resolvable:$true] %s19
      %22 = dma.hbm_to_vmem [thread:$0]  %s18, 1024, %s20, [#allocation4]
    $region9: #{tpu_custom_call.1} parent=1 // pred_fallthru
      _
    // Predicated region
    $region10: #{tpu_custom_call.1} parent=1 // pred_check
      _
    $region11: #{tpu_custom_call.1} parent=1 // pred_check_branch
      %24 = sbr.rel (0) target = $region13
    $region12: #{tpu_custom_call.1} parent=1 // pred_region
      %26 = dma.done [#allocation4], 1024
    $region13: #{tpu_custom_call.1} parent=1 // pred_fallthru
      _
    %v27 = vlaneseq
    %v28 = vshrl.u32 %v27, 7
    %v29 = vlaneseq
    %v30 = vand.u32 %v29, 127
    %v31 = vadd.s32 %v30, 128
    %v32 = vadd.s32 %v30, 256
    %v33 = vadd.s32 %v30, 384
    %v34 = vadd.s32 %v30, 512
    %v35 = vadd.s32 %v30, 640
    %v36 = vadd.s32 %v30, 768
    %v37 = vadd.s32 %v30, 896
    %s38 = smul.u32 0, 8
    %v39 = vstv %s38
    %v40 = vadd.s32 %v39, %v28
    %v41 = vmul.u32 %v40, 1024
    %v42 = vadd.s32 %v41, %v30
    %v43 = vadd.s32 %v41, %v31
    %v44 = vadd.s32 %v41, %v32
    %v45 = vadd.s32 %v41, %v33
    %v46 = vadd.s32 %v41, %v34
    %v47 = vadd.s32 %v41, %v35
    %v48 = vadd.s32 %v41, %v36
    %v49 = vadd.s32 %v41, %v37
    %s50 = sld [smem:[#allocation2]]
    %s51 = smul.u32 %s50, 1000003
    %v52 = vstv %s51
    %v53 = vadd.s32 %v42, %v52
    %v54 = vadd.s32 %v43, %v52
    %v55 = vadd.s32 %v44, %v52
    %v56 = vadd.s32 %v45, %v52
    %v57 = vadd.s32 %v46, %v52
    %v58 = vadd.s32 %v47, %v52
    %v59 = vadd.s32 %v48, %v52
    %v60 = vadd.s32 %v49, %v52
    %v61 = vxor.u32 %v53, 2654435769
    %v62 = vxor.u32 %v54, 2654435769
    %v63 = vxor.u32 %v55, 2654435769
    %v64 = vxor.u32 %v56, 2654435769
    %v65 = vxor.u32 %v57, 2654435769
    %v66 = vxor.u32 %v58, 2654435769
    %v67 = vxor.u32 %v59, 2654435769
    %v68 = vxor.u32 %v60, 2654435769
    %v69 = vshrl.u32 %v61, 16
    %v70 = vshrl.u32 %v62, 16
    %v71 = vshrl.u32 %v63, 16
    %v72 = vshrl.u32 %v64, 16
    %v73 = vshrl.u32 %v65, 16
    %v74 = vshrl.u32 %v66, 16
    %v75 = vshrl.u32 %v67, 16
    %v76 = vshrl.u32 %v68, 16
    %v77 = vxor.u32 %v61, %v69
    %v78 = vxor.u32 %v62, %v70
    %v79 = vxor.u32 %v63, %v71
    %v80 = vxor.u32 %v64, %v72
    %v81 = vxor.u32 %v65, %v73
    %v82 = vxor.u32 %v66, %v74
    %v83 = vxor.u32 %v67, %v75
    %v84 = vxor.u32 %v68, %v76
    %v85 = vmul.u32 %v77, 2146121005
    %v86 = vmul.u32 %v78, 2146121005
    %v87 = vmul.u32 %v79, 2146121005
    %v88 = vmul.u32 %v80, 2146121005
    %v89 = vmul.u32 %v81, 2146121005
    %v90 = vmul.u32 %v82, 2146121005
    %v91 = vmul.u32 %v83, 2146121005
    %v92 = vmul.u32 %v84, 2146121005
    %v93 = vshrl.u32 %v85, 15
    %v94 = vshrl.u32 %v86, 15
    %v95 = vshrl.u32 %v87, 15
    %v96 = vshrl.u32 %v88, 15
    %v97 = vshrl.u32 %v89, 15
    %v98 = vshrl.u32 %v90, 15
    %v99 = vshrl.u32 %v91, 15
    %v100 = vshrl.u32 %v92, 15
    %v101 = vxor.u32 %v85, %v93
    %v102 = vxor.u32 %v86, %v94
    %v103 = vxor.u32 %v87, %v95
    %v104 = vxor.u32 %v88, %v96
    %v105 = vxor.u32 %v89, %v97
    %v106 = vxor.u32 %v90, %v98
    %v107 = vxor.u32 %v91, %v99
    %v108 = vxor.u32 %v92, %v100
    %v109 = vmul.u32 %v101, 2221713035
    %v110 = vmul.u32 %v102, 2221713035
    %v111 = vmul.u32 %v103, 2221713035
    %v112 = vmul.u32 %v104, 2221713035
    %v113 = vmul.u32 %v105, 2221713035
    %v114 = vmul.u32 %v106, 2221713035
    %v115 = vmul.u32 %v107, 2221713035
    %v116 = vmul.u32 %v108, 2221713035
    %v117 = vshrl.u32 %v109, 16
    %v118 = vshrl.u32 %v110, 16
    %v119 = vshrl.u32 %v111, 16
    %v120 = vshrl.u32 %v112, 16
    %v121 = vshrl.u32 %v113, 16
    %v122 = vshrl.u32 %v114, 16
    %v123 = vshrl.u32 %v115, 16
    %v124 = vshrl.u32 %v116, 16
    %v125 = vxor.u32 %v109, %v117
    %v126 = vxor.u32 %v110, %v118
    %v127 = vxor.u32 %v111, %v119
    %v128 = vxor.u32 %v112, %v120
    %v129 = vxor.u32 %v113, %v121
    %v130 = vxor.u32 %v114, %v122
    %v131 = vxor.u32 %v115, %v123
    %v132 = vxor.u32 %v116, %v124
    %v133 = vshrl.u32 %v125, 9
    %v134 = vshrl.u32 %v126, 9
    %v135 = vshrl.u32 %v127, 9
    %v136 = vshrl.u32 %v128, 9
    %v137 = vshrl.u32 %v129, 9
    %v138 = vshrl.u32 %v130, 9
    %v139 = vshrl.u32 %v131, 9
    %v140 = vshrl.u32 %v132, 9
    %v141 = vor.u32 %v133, 1065353216
    %v142 = vor.u32 %v134, 1065353216
    %v143 = vor.u32 %v135, 1065353216
    %v144 = vor.u32 %v136, 1065353216
    %v145 = vor.u32 %v137, 1065353216
    %v146 = vor.u32 %v138, 1065353216
    %v147 = vor.u32 %v139, 1065353216
    %v148 = vor.u32 %v140, 1065353216
    %v157 = vsub.f32 %v141, 1.0
    %v158 = vsub.f32 %v142, 1.0
    %v159 = vsub.f32 %v143, 1.0
    %v160 = vsub.f32 %v144, 1.0
    %v161 = vsub.f32 %v145, 1.0
    %v162 = vsub.f32 %v146, 1.0
    %v163 = vsub.f32 %v147, 1.0
    %v164 = vsub.f32 %v148, 1.0
    %v165 = vadd.f32 %v157, 0.0
    %v166 = vadd.f32 %v158, 0.0
    %v167 = vadd.f32 %v159, 0.0
    %v168 = vadd.f32 %v160, 0.0
    %v169 = vadd.f32 %v161, 0.0
    %v170 = vadd.f32 %v162, 0.0
    %v171 = vadd.f32 %v163, 0.0
    %v172 = vadd.f32 %v164, 0.0
    %v173 = vld [vmem:[#allocation3] sm:$0xff]
    %v174 = vld [vmem:[#allocation3 + $0x8] sm:$0xff]
    %v175 = vld [vmem:[#allocation3 + $0x10] sm:$0xff]
    %v176 = vld [vmem:[#allocation3 + $0x18] sm:$0xff]
    %v177 = vld [vmem:[#allocation3 + $0x20] sm:$0xff]
    %v178 = vld [vmem:[#allocation3 + $0x28] sm:$0xff]
    %v179 = vld [vmem:[#allocation3 + $0x30] sm:$0xff]
    %v180 = vld [vmem:[#allocation3 + $0x38] sm:$0xff]
    %v181 = vadd.f32 %v173, %v165
    %v182 = vadd.f32 %v174, %v166
    %v183 = vadd.f32 %v175, %v167
    %v184 = vadd.f32 %v176, %v168
    %v185 = vadd.f32 %v177, %v169
    %v186 = vadd.f32 %v178, %v170
    %v187 = vadd.f32 %v179, %v171
    %v188 = vadd.f32 %v180, %v172
    %189 = vst [vmem:[#allocation6] sm:$0xff] %v181
    %190 = vst [vmem:[#allocation6 + $0x8] sm:$0xff] %v182
    %191 = vst [vmem:[#allocation6 + $0x10] sm:$0xff] %v183
    %192 = vst [vmem:[#allocation6 + $0x18] sm:$0xff] %v184
    %193 = vst [vmem:[#allocation6 + $0x20] sm:$0xff] %v185
    %194 = vst [vmem:[#allocation6 + $0x28] sm:$0xff] %v186
    %195 = vst [vmem:[#allocation6 + $0x30] sm:$0xff] %v187
    %196 = vst [vmem:[#allocation6 + $0x38] sm:$0xff] %v188
    // Predicated region
    $region14: #{tpu_custom_call.1} parent=1 // pred_check
      _
    $region15: #{tpu_custom_call.1} parent=1 // pred_check_branch
      %198 = sbr.rel (0) target = $region17
    $region16: #{tpu_custom_call.1} parent=1 // pred_region
      %200 = vsyncadd [#allocation5], 0
      %s202 = sshll.u32 [#allocation6], 4
      %s203 = int_to_ptr.vmem [resolvable:$true] %s202
      %s204 = sshll.u32 %s2, 4
      %s205 = int_to_ptr.hbm [resolvable:$true] %s204
      %207 = dma.vmem_to_hbm [thread:$0]  %s203, 1024, %s205, [#allocation5]
    $region17: #{tpu_custom_call.1} parent=1 // pred_fallthru
      _
    // Predicated region
    $region18: #{tpu_custom_call.1} parent=1 // pred_check
      _
    $region19: #{tpu_custom_call.1} parent=1 // pred_check_branch
      %209 = sbr.rel (0) target = $region21
    $region20: #{tpu_custom_call.1} parent=1 // pred_region
      %211 = dma.done [#allocation5], 1024
    $region21: #{tpu_custom_call.1} parent=1 // pred_fallthru
      _
    %212 = vsyncpa [#allocation4], 1
    %213 = vsyncpa [#allocation5], 1

</llo_original>
